<compile_context>
chip_gen: v7x
topology: tpu7x:2x2x1
jax: 0.10.0
libtpu: 0.0.40
codegen_flags: <defaults>
</compile_context>

<pallas_src>
import functools

import jax
import jax.numpy as jnp
from jax.experimental import pallas as pl
from jax.experimental.pallas import tpu as pltpu


def _conv_lstm_kernel(p_ref, c_ref, w_ref, b_ref, h_out_ref, c_out_ref, *, hidden):
    """One (batch element, spatial tile) per grid step.

    p_ref    : (K, TS)        im2col patches (K = kh*kw*Ctot), spatial on lanes
    c_ref    : (hidden, TS)   current cell state
    w_ref    : (4*hidden, K)  conv weight flattened to matmul form
    b_ref    : (4*hidden, 1)  conv bias
    h_out_ref, c_out_ref : (hidden, TS)
    """
    gates = jnp.dot(w_ref[...], p_ref[...], preferred_element_type=jnp.float32)
    gates = gates + b_ref[...].astype(jnp.float32)          # lane-broadcast bias

    i = jax.nn.sigmoid(gates[0 * hidden:1 * hidden, :])
    f = jax.nn.sigmoid(gates[1 * hidden:2 * hidden, :])
    o = jax.nn.sigmoid(gates[2 * hidden:3 * hidden, :])
    g = jnp.tanh(gates[3 * hidden:4 * hidden, :])

    c_cur = c_ref[...].astype(jnp.float32)
    c_next = f * c_cur + i * g
    h_next = o * jnp.tanh(c_next)

    c_out_ref[...] = c_next.astype(c_out_ref.dtype)
    h_out_ref[...] = h_next.astype(h_out_ref.dtype)


def _pick_spatial_tile(n_spatial, batch):
    """Largest multiple-of-128 tile dividing H*W that keeps the grid >=4 deep."""
    if n_spatial % 128 != 0:
        return n_spatial                       # full extent (legal block shape)
    for cand in (2048, 1024, 512, 256, 128):
        if n_spatial % cand == 0 and batch * (n_spatial // cand) >= 4:
            return cand
    return 128


def conv_lstm_cell_pallas(x_nchw, h_nchw, c_nchw, weight_oihw, bias, kernel_size):
    """ConvLSTMCell forward. Inputs/outputs in NCHW (PyTorch convention)."""
    kh, kw = kernel_size
    ph, pw = kh // 2, kw // 2

    B, Cin, H, W = x_nchw.shape
    hidden = h_nchw.shape[1]
    Ctot = Cin + hidden
    K = kh * kw * Ctot
    n_spatial = H * W
    ts = _pick_spatial_tile(n_spatial, B)
    n_tiles = n_spatial // ts
    dtype = x_nchw.dtype

    # --- im2col, channels-first (no layout transposes; tiny XLA prep) --------
    comb = jnp.concatenate([x_nchw, h_nchw], axis=1)               # (B, Ctot, H, W)
    comb_p = jnp.pad(comb, ((0, 0), (0, 0), (ph, ph), (pw, pw)))   # zero "same" pad
    slabs = [comb_p[:, :, dy:dy + H, dx:dx + W]
             for dy in range(kh) for dx in range(kw)]
    patches = jnp.stack(slabs, axis=1)                             # (B, kh*kw, Ctot, H, W)
    patches = patches.reshape(B, K, n_spatial)                     # (B, K, H*W)

    # weight (4*hidden, Ctot, kh, kw) -> (4*hidden, K), K ordered as (dy, dx, c)
    w2 = jnp.transpose(weight_oihw, (0, 2, 3, 1)).reshape(4 * hidden, K)
    b2 = bias.reshape(4 * hidden, 1)
    c_flat = c_nchw.reshape(B, hidden, n_spatial)

    kernel = functools.partial(_conv_lstm_kernel, hidden=hidden)

    itemsize = jnp.dtype(dtype).itemsize
    cost = pl.CostEstimate(
        flops=2 * B * n_spatial * K * 4 * hidden,
        transcendentals=5 * B * n_spatial * hidden,
        bytes_accessed=(patches.size + w2.size + b2.size + c_flat.size
                        + 2 * B * hidden * n_spatial) * itemsize,
    )

    h_next, c_next = pl.pallas_call(
        kernel,
        out_shape=(
            jax.ShapeDtypeStruct((B, hidden, n_spatial), dtype),
            jax.ShapeDtypeStruct((B, hidden, n_spatial), dtype),
        ),
        grid_spec=pltpu.PrefetchScalarGridSpec(
            num_scalar_prefetch=0,
            grid=(B, n_tiles),
            in_specs=[
                pl.BlockSpec((None, K, ts), lambda b, s: (b, 0, s)),
                pl.BlockSpec((None, hidden, ts), lambda b, s: (b, 0, s)),
                pl.BlockSpec((4 * hidden, K), lambda b, s: (0, 0)),
                pl.BlockSpec((4 * hidden, 1), lambda b, s: (0, 0)),
            ],
            out_specs=[
                pl.BlockSpec((None, hidden, ts), lambda b, s: (b, 0, s)),
                pl.BlockSpec((None, hidden, ts), lambda b, s: (b, 0, s)),
            ],
        ),
        compiler_params=pltpu.CompilerParams(
            dimension_semantics=("parallel", "parallel")),
        cost_estimate=cost,
    )(patches, c_flat, w2, b2)

    h_next = h_next.reshape(B, hidden, H, W)
    c_next = c_next.reshape(B, hidden, H, W)
    return h_next, c_next


def _reference_cell_nchw(x, h, c, weight_oihw, bias, kernel_size):
    """Pure-JAX reference matching the PyTorch ConvLSTMCell semantics."""
    kh, kw = kernel_size
    ph, pw = kh // 2, kw // 2
    comb = jnp.concatenate([x, h], axis=1)
    conv = jax.lax.conv_general_dilated(
        comb, weight_oihw, window_strides=(1, 1),
        padding=((ph, ph), (pw, pw)),
        dimension_numbers=("NCHW", "OIHW", "NCHW"))
    conv = conv + bias[None, :, None, None]
    hidden = h.shape[1]
    cc_i, cc_f, cc_o, cc_g = jnp.split(conv, 4, axis=1)
    i = jax.nn.sigmoid(cc_i)
    f = jax.nn.sigmoid(cc_f)
    o = jax.nn.sigmoid(cc_o)
    g = jnp.tanh(cc_g)
    c_next = f * c + i * g
    h_next = o * jnp.tanh(c_next)
    return h_next, c_next


def conv_lstm_forward(x_btchw, params, kernel_size, cell_fn):
    """ConvLSTM.forward (batch_first=True, return_all_layers=False).

    params: list of (weight_oihw, bias) per layer.
    Returns (last_layer_output (B,T,hid,H,W), (h_last, c_last)).
    """
    B, T, _, H, W = x_btchw.shape
    cur = x_btchw
    last = None
    for (w, b) in params:
        hidden = w.shape[0] // 4
        h = jnp.zeros((B, hidden, H, W), x_btchw.dtype)
        c = jnp.zeros((B, hidden, H, W), x_btchw.dtype)
        outs = []
        for t in range(T):
            h, c = cell_fn(cur[:, t], h, c, w, b, kernel_size)
            outs.append(h)
        cur = jnp.stack(outs, axis=1)
        last = (h, c)
    return cur, last


if __name__ == "__main__":
    # ConvLSTMCell(input_dim=4, hidden_dim=8, kernel_size=(3,3), bias=True)
    B, Cin, H, W, T = 2, 4, 16, 16, 8
    hidden = 8
    kernel_size = (3, 3)
    Ctot = Cin + hidden

    key = jax.random.PRNGKey(0)
    k_x, k_h, k_c, k_w, k_b, k_seq = jax.random.split(key, 6)

    x = jax.random.normal(k_x, (B, Cin, H, W), dtype=jnp.float32)
    h_cur = jax.random.normal(k_h, (B, hidden, H, W), dtype=jnp.float32)
    c_cur = jax.random.normal(k_c, (B, hidden, H, W), dtype=jnp.float32)

    # nn.Conv2d(in=Cin+hidden, out=4*hidden, kernel=(3,3), bias=True) parameters.
    weight = 0.1 * jax.random.normal(
        k_w, (4 * hidden, Ctot, kernel_size[0], kernel_size[1]), dtype=jnp.float32)
    bias = 0.1 * jax.random.normal(k_b, (4 * hidden,), dtype=jnp.float32)

    # --- single ConvLSTMCell step ---------------------------------------
    h_next, c_next = conv_lstm_cell_pallas(x, h_cur, c_cur, weight, bias, kernel_size)
    jax.block_until_ready((h_next, c_next))
    h_ref, c_ref = _reference_cell_nchw(x, h_cur, c_cur, weight, bias, kernel_size)
    assert jnp.allclose(h_next, h_ref, atol=1e-4, rtol=1e-4), "h_next mismatch"
    assert jnp.allclose(c_next, c_ref, atol=1e-4, rtol=1e-4), "c_next mismatch"

    # --- ConvLSTM sequence (num_layers=1, batch_first=True, seq=8) -------
    x_seq = jax.random.normal(k_seq, (B, T, Cin, H, W), dtype=jnp.float32)
    params = [(weight, bias)]

    seq_pallas = jax.jit(functools.partial(
        conv_lstm_forward, params=params, kernel_size=kernel_size,
        cell_fn=conv_lstm_cell_pallas))
    out_pallas, (h_last, c_last) = seq_pallas(x_seq)
    jax.block_until_ready((out_pallas, h_last, c_last))

    out_ref, (h_last_ref, c_last_ref) = conv_lstm_forward(
        x_seq, params, kernel_size, _reference_cell_nchw)

    assert jnp.allclose(out_pallas, out_ref, atol=1e-3, rtol=1e-3), "seq output mismatch"
    assert jnp.allclose(h_last, h_last_ref, atol=1e-3, rtol=1e-3), "h_last mismatch"
    assert jnp.allclose(c_last, c_last_ref, atol=1e-3, rtol=1e-3), "c_last mismatch"

    print("KERNEL_OK")
</pallas_src>

<mosaic_0001>
module attributes {stable_mosaic.version = 11 : i64} {
  func.func @_conv_lstm_kernel(%arg0: i32, %arg1: i32, %arg2: memref<1x108x128xf32, #tpu.memory_space<vmem>>, %arg3: memref<1x8x128xf32, #tpu.memory_space<vmem>>, %arg4: memref<32x108xf32, #tpu.memory_space<vmem>>, %arg5: memref<32x1xf32, #tpu.memory_space<vmem>>, %arg6: memref<1x8x128xf32, #tpu.memory_space<vmem>>, %arg7: memref<1x8x128xf32, #tpu.memory_space<vmem>>) attributes {dimension_semantics = [#tpu.dimension_semantics<parallel>, #tpu.dimension_semantics<parallel>], iteration_bounds = array<i64: 2, 2>, scalar_prefetch = 0 : i64, scratch_operands = 0 : i64, tpu.core_type = #tpu.core_type<tc>, window_params = [{transform_indices = @transform_0, window_bounds = array<i64: 1, 108, 128>}, {transform_indices = @transform_1, window_bounds = array<i64: 1, 8, 128>}, {pipeline_mode = #tpu.pipeline_mode<synchronous>, transform_indices = @transform_2, window_bounds = array<i64: 32, 108>}, {pipeline_mode = #tpu.pipeline_mode<synchronous>, transform_indices = @transform_3, window_bounds = array<i64: 32, 1>}, {transform_indices = @transform_4, window_bounds = array<i64: 1, 8, 128>}, {transform_indices = @transform_5, window_bounds = array<i64: 1, 8, 128>}]} {
    %c0 = arith.constant 0 : index
    %c0_0 = arith.constant 0 : index
    %0 = vector.load %arg4[%c0, %c0_0] : memref<32x108xf32, #tpu.memory_space<vmem>>, vector<32x108xf32>
    %c0_1 = arith.constant 0 : index
    %c0_2 = arith.constant 0 : index
    %c0_3 = arith.constant 0 : index
    %1 = vector.load %arg2[%c0_1, %c0_2, %c0_3] : memref<1x108x128xf32, #tpu.memory_space<vmem>>, vector<1x108x128xf32>
    %2 = vector.shape_cast %1 : vector<1x108x128xf32> to vector<108x128xf32>
    %cst = arith.constant dense<0.000000e+00> : vector<32x128xf32>
    %3 = tpu.matmul %0, %2, %cst {dimension_numbers = #tpu.dot_dimension_numbers<[1], [0], [0], [1], [0, 0, 1, 1], [], []>} : vector<32x108xf32>, vector<108x128xf32>, vector<32x128xf32> -> vector<32x128xf32>
    %c0_4 = arith.constant 0 : index
    %c0_5 = arith.constant 0 : index
    %4 = vector.load %arg5[%c0_4, %c0_5] : memref<32x1xf32, #tpu.memory_space<vmem>>, vector<32x1xf32>
    %5 = vector.broadcast %4 : vector<32x1xf32> to vector<32x128xf32>
    %6 = arith.addf %3, %5 : vector<32x128xf32>
    %7 = vector.extract_strided_slice %6 {offsets = [0, 0], sizes = [8, 128], strides = [1, 1]} : vector<32x128xf32> to vector<8x128xf32>
    %8 = arith.negf %7 : vector<8x128xf32>
    %9 = math.exp %8 : vector<8x128xf32>
    %cst_6 = arith.constant 1.000000e+00 : f32
    %10 = vector.broadcast %cst_6 : f32 to vector<8x128xf32>
    %11 = arith.addf %10, %9 : vector<8x128xf32>
    %12 = arith.divf %10, %11 : vector<8x128xf32>
    %13 = vector.extract_strided_slice %6 {offsets = [8, 0], sizes = [8, 128], strides = [1, 1]} : vector<32x128xf32> to vector<8x128xf32>
    %14 = arith.negf %13 : vector<8x128xf32>
    %15 = math.exp %14 : vector<8x128xf32>
    %cst_7 = arith.constant 1.000000e+00 : f32
    %16 = vector.broadcast %cst_7 : f32 to vector<8x128xf32>
    %17 = arith.addf %16, %15 : vector<8x128xf32>
    %18 = arith.divf %16, %17 : vector<8x128xf32>
    %19 = vector.extract_strided_slice %6 {offsets = [16, 0], sizes = [8, 128], strides = [1, 1]} : vector<32x128xf32> to vector<8x128xf32>
    %20 = arith.negf %19 : vector<8x128xf32>
    %21 = math.exp %20 : vector<8x128xf32>
    %cst_8 = arith.constant 1.000000e+00 : f32
    %22 = vector.broadcast %cst_8 : f32 to vector<8x128xf32>
    %23 = arith.addf %22, %21 : vector<8x128xf32>
    %24 = arith.divf %22, %23 : vector<8x128xf32>
    %25 = vector.extract_strided_slice %6 {offsets = [24, 0], sizes = [8, 128], strides = [1, 1]} : vector<32x128xf32> to vector<8x128xf32>
    %26 = math.tanh %25 : vector<8x128xf32>
    %c0_9 = arith.constant 0 : index
    %c0_10 = arith.constant 0 : index
    %c0_11 = arith.constant 0 : index
    %27 = vector.load %arg3[%c0_9, %c0_10, %c0_11] : memref<1x8x128xf32, #tpu.memory_space<vmem>>, vector<1x8x128xf32>
    %28 = vector.shape_cast %27 : vector<1x8x128xf32> to vector<8x128xf32>
    %29 = arith.mulf %18, %28 : vector<8x128xf32>
    %30 = arith.mulf %12, %26 : vector<8x128xf32>
    %31 = arith.addf %29, %30 : vector<8x128xf32>
    %32 = math.tanh %31 : vector<8x128xf32>
    %33 = arith.mulf %24, %32 : vector<8x128xf32>
    %c0_12 = arith.constant 0 : index
    %c0_13 = arith.constant 0 : index
    %c0_14 = arith.constant 0 : index
    %34 = vector.load %arg7[%c0_12, %c0_13, %c0_14] : memref<1x8x128xf32, #tpu.memory_space<vmem>>, vector<1x8x128xf32>
    %35 = vector.shape_cast %34 : vector<1x8x128xf32> to vector<8x128xf32>
    %36 = vector.shape_cast %31 : vector<8x128xf32> to vector<1x8x128xf32>
    tpu.vector_store %arg7[%c0_12, %c0_13, %c0_14], %36 {strides = array<i32>} : memref<1x8x128xf32, #tpu.memory_space<vmem>>, vector<1x8x128xf32>,
    %c0_15 = arith.constant 0 : index
    %c0_16 = arith.constant 0 : index
    %c0_17 = arith.constant 0 : index
    %37 = vector.load %arg6[%c0_15, %c0_16, %c0_17] : memref<1x8x128xf32, #tpu.memory_space<vmem>>, vector<1x8x128xf32>
    %38 = vector.shape_cast %37 : vector<1x8x128xf32> to vector<8x128xf32>
    %39 = vector.shape_cast %33 : vector<8x128xf32> to vector<1x8x128xf32>
    tpu.vector_store %arg6[%c0_15, %c0_16, %c0_17], %39 {strides = array<i32>} : memref<1x8x128xf32, #tpu.memory_space<vmem>>, vector<1x8x128xf32>,
    return
  }
  func.func @transform_0(%arg0: i32, %arg1: i32) -> (i32, i32, i32) {
    %c0_i32 = arith.constant 0 : i32
    %c0_i32_0 = arith.constant 0 : i32
    return %arg0, %c0_i32, %arg1 : i32, i32, i32
  }
  func.func @transform_1(%arg0: i32, %arg1: i32) -> (i32, i32, i32) {
    %c0_i32 = arith.constant 0 : i32
    %c0_i32_0 = arith.constant 0 : i32
    return %arg0, %c0_i32, %arg1 : i32, i32, i32
  }
  func.func @transform_2(%arg0: i32, %arg1: i32) -> (i32, i32) {
    %c0_i32 = arith.constant 0 : i32
    %c0_i32_0 = arith.constant 0 : i32
    %c0_i32_1 = arith.constant 0 : i32
    return %c0_i32, %c0_i32_0 : i32, i32
  }
  func.func @transform_3(%arg0: i32, %arg1: i32) -> (i32, i32) {
    %c0_i32 = arith.constant 0 : i32
    %c0_i32_0 = arith.constant 0 : i32
    %c0_i32_1 = arith.constant 0 : i32
    return %c0_i32, %c0_i32_0 : i32, i32
  }
  func.func @transform_4(%arg0: i32, %arg1: i32) -> (i32, i32, i32) {
    %c0_i32 = arith.constant 0 : i32
    %c0_i32_0 = arith.constant 0 : i32
    return %arg0, %c0_i32, %arg1 : i32, i32, i32
  }
  func.func @transform_5(%arg0: i32, %arg1: i32) -> (i32, i32, i32) {
    %c0_i32 = arith.constant 0 : i32
    %c0_i32_0 = arith.constant 0 : i32
    return %arg0, %c0_i32, %arg1 : i32, i32, i32
  }
}

</mosaic_0001>

<llo_original>
// kernel: tpu_custom_call.1
$region0: #{tpu_custom_call.1}
  #allocation0 [shape = 'u32[]', space=smem, size = 0x4, offset = 0x4, fixed_abs, tag = 'smem constant byte address 0x4 - core index']
  #allocation1 [shape = 'u32[144,128]{1,0:T(1,128)}', space=vmem, size = 0x12000, scoped, tag = 'internal scratch']
  %s0 = inlined_call_operand.vmem [shape: f32[2,108,256], index: 0, kind: input, shape index: {}]
  %s1 = inlined_call_operand.vmem [shape: f32[2,8,256], index: 1, kind: input, shape index: {}]
  %s2 = inlined_call_operand.vmem [shape: f32[32,108], index: 2, kind: input, shape index: {}]
  %s3 = inlined_call_operand.vmem [shape: f32[32,1], index: 3, kind: input, shape index: {}]
  %s4 = inlined_call_operand.hbm [shape: f32[2,8,256], index: 4, kind: output, shape index: {0}]
  %s5 = inlined_call_operand.hbm [shape: f32[2,8,256], index: 5, kind: output, shape index: {1}]
  %6 = xla_tuple %s4, %s5
  %s7 = sld [smem:[#allocation0]]
  $region95: #{tpu_custom_call.1} parent=0
    _
  %s9 = ssub.s32 1, %s7
  %s10 = scalar_select 0, %s9, %s7
  $region1: #{tpu_custom_call.1} parent=0
    #allocation2 [shape = 'u8[114688]{0}', space=vmem, size = 0x1c000, scoped, tag = 'input window, operand 0']
    #allocation3 [shape = 'u8[8192]{0}', space=vmem, size = 0x2000, scoped, tag = 'output window, operand 0']
    #allocation4 [shape = 's32[2]{0}', space=sflag, size = 0x8, scoped, tag = 'scoped memory for tpu_custom_call.1']
    #allocation5 [shape = 'u8[8192]{0}', space=vmem, size = 0x2000, scoped, tag = 'output window, operand 1']
    #allocation6 [shape = 's32[2]{0}', space=sflag, size = 0x8, scoped, tag = 'scoped memory for tpu_custom_call.1']
    %11 = vsyncpa [#allocation4], 0
    %s12 = scalar_lea.sflag [#allocation4], 1
    %13 = vsyncpa %s12, 0
    %14 = vsyncpa [#allocation6], 0
    %s15 = scalar_lea.sflag [#allocation6], 1
    %16 = vsyncpa %s15, 0
    loop: start=0, step=1, limit=6
    $region2: #{tpu_custom_call.1} parent=1 // loop_pre_header
      _
    $region3: #{tpu_custom_call.1} parent=1 // loop_header
      %s18 = sphi 0, %s22
      %p19 = scmp.ge.s32.totalorder %s18, 6
      %s25 = sphi 0, %s37
      %s26 = sphi 0, %s33
      %s27 = sphi 0, %s25
      %s28 = sphi 0, %s26
      %s29 = sphi 0, %s27
      %s30 = sphi 0, %s28
      %s42 = sphi 0, %s44
      %s45 = sphi 0, %s42
      %s46 = sphi 0, %s45
      %s62 = sphi 0, %s46
      %s70 = sphi 0, %s72
      %s73 = sphi 0, %s70
      %s74 = sphi 0, %s73
      %s90 = sphi 0, %s74
      %s94 = sphi 0, %s94
      %s96 = sphi 0, %s94
      %s97 = sphi 0, %s96
      %s111 = sphi 0, %s97
      %s115 = sphi 0, %s115
      %s117 = sphi 0, %s115
      %s118 = sphi 0, %s117
      %s132 = sphi 0, %s118
      %s140 = sphi 0, %s142
      %s143 = sphi 0, %s140
      %s144 = sphi 0, %s143
      %s160 = sphi 0, %s144
      %s168 = sphi 0, %s170
      %s171 = sphi 0, %s168
      %s172 = sphi 0, %s171
      %s188 = sphi 0, %s172
    $region4: #{tpu_custom_call.1} parent=1 // loop_header_branch
      %21 = sbr.rel (%p19) target = $region8
    $region5: #{tpu_custom_call.1} parent=1 // loop_body
      %s23 = ssub.s32 %s18, 1
      %s24 = ssub.s32 %s18, 2
      %s31 = sadd.s32 1, %s26
      %p32 = scmp.ge.s32.totalorder %s31, 2
      %s33 = scalar_select %p32, 0, %s31
      %s34 = sadd.s32 1, %s25
      %s35 = scalar_select %p32, %s34, %s25
      %p36 = scmp.ge.s32.totalorder %s35, 2
      %s37 = scalar_select %p36, 0, %s35
      %s38 = ssub.s32 %s25, %s37
      %s39 = ssub.s32 %s26, %s33
      %s40 = sor.u32 %s38, %s39
      %p41 = scmp.eq.s32.totalorder %s40, 0
      %s43 = sadd.s32 %s42, 1
      %s44 = scalar_select %p41, %s42, %s43
      %p47 = pneg %p41
      %p48 = scmp.eq.s32.totalorder %s18, 3
      %p49 = por %p47, %p48
      %p50 = scmp.ne.s32.totalorder %s42, %s45
      %p51 = scmp.eq.s32.totalorder %s18, 0
      %p52 = por %p50, %p51
      %p53 = scmp.ne.s32.totalorder %s42, %s45
      %p54 = scmp.eq.s32.totalorder %s23, 3
      %p55 = por %p53, %p54
      %p56 = scmp.ne.s32.totalorder %s45, %s46
      %p57 = scmp.eq.s32.totalorder %s23, 0
      %p58 = por %p56, %p57
      %p59 = scmp.ne.s32.totalorder %s45, %s46
      %p60 = scmp.eq.s32.totalorder %s24, 3
      %p61 = por %p59, %p60
      %p63 = scmp.ne.s32.totalorder %s46, %s62
      %p64 = scmp.eq.s32.totalorder %s24, 0
      %p65 = por %p63, %p64
      %s66 = ssub.s32 %s25, %s37
      %s67 = ssub.s32 %s26, %s33
      %s68 = sor.u32 %s66, %s67
      %p69 = scmp.eq.s32.totalorder %s68, 0
      %s71 = sadd.s32 %s70, 1
      %s72 = scalar_select %p69, %s70, %s71
      %p75 = pneg %p69
      %p76 = scmp.eq.s32.totalorder %s18, 3
      %p77 = por %p75, %p76
      %p78 = scmp.ne.s32.totalorder %s70, %s73
      %p79 = scmp.eq.s32.totalorder %s18, 0
      %p80 = por %p78, %p79
      %p81 = scmp.ne.s32.totalorder %s70, %s73
      %p82 = scmp.eq.s32.totalorder %s23, 3
      %p83 = por %p81, %p82
      %p84 = scmp.ne.s32.totalorder %s73, %s74
      %p85 = scmp.eq.s32.totalorder %s23, 0
      %p86 = por %p84, %p85
      %p87 = scmp.ne.s32.totalorder %s73, %s74
      %p88 = scmp.eq.s32.totalorder %s24, 3
      %p89 = por %p87, %p88
      %p91 = scmp.ne.s32.totalorder %s74, %s90
      %p92 = scmp.eq.s32.totalorder %s24, 0
      %p93 = por %p91, %p92
      %s95 = sadd.s32 %s94, 1
      %p98 = scmp.eq.s32.totalorder %s18, 3
      %p99 = scmp.ne.s32.totalorder %s94, %s96
      %p100 = scmp.eq.s32.totalorder %s18, 0
      %p101 = por %p99, %p100
      %p102 = scmp.ne.s32.totalorder %s94, %s96
      %p103 = scmp.eq.s32.totalorder %s23, 3
      %p104 = por %p102, %p103
      %p105 = scmp.ne.s32.totalorder %s96, %s97
      %p106 = scmp.eq.s32.totalorder %s23, 0
      %p107 = por %p105, %p106
      %p108 = scmp.ne.s32.totalorder %s96, %s97
      %p109 = scmp.eq.s32.totalorder %s24, 3
      %p110 = por %p108, %p109
      %p112 = scmp.ne.s32.totalorder %s97, %s111
      %p113 = scmp.eq.s32.totalorder %s24, 0
      %p114 = por %p112, %p113
      %s116 = sadd.s32 %s115, 1
      %p119 = scmp.eq.s32.totalorder %s18, 3
      %p120 = scmp.ne.s32.totalorder %s115, %s117
      %p121 = scmp.eq.s32.totalorder %s18, 0
      %p122 = por %p120, %p121
      %p123 = scmp.ne.s32.totalorder %s115, %s117
      %p124 = scmp.eq.s32.totalorder %s23, 3
      %p125 = por %p123, %p124
      %p126 = scmp.ne.s32.totalorder %s117, %s118
      %p127 = scmp.eq.s32.totalorder %s23, 0
      %p128 = por %p126, %p127
      %p129 = scmp.ne.s32.totalorder %s117, %s118
      %p130 = scmp.eq.s32.totalorder %s24, 3
      %p131 = por %p129, %p130
      %p133 = scmp.ne.s32.totalorder %s118, %s132
      %p134 = scmp.eq.s32.totalorder %s24, 0
      %p135 = por %p133, %p134
      %s136 = ssub.s32 %s25, %s37
      %s137 = ssub.s32 %s26, %s33
      %s138 = sor.u32 %s136, %s137
      %p139 = scmp.eq.s32.totalorder %s138, 0
      %s141 = sadd.s32 %s140, 1
      %s142 = scalar_select %p139, %s140, %s141
      %p145 = pneg %p139
      %p146 = scmp.eq.s32.totalorder %s18, 3
      %p147 = por %p145, %p146
      %p148 = scmp.ne.s32.totalorder %s140, %s143
      %p149 = scmp.eq.s32.totalorder %s18, 0
      %p150 = por %p148, %p149
      %p151 = scmp.ne.s32.totalorder %s140, %s143
      %p152 = scmp.eq.s32.totalorder %s23, 3
      %p153 = por %p151, %p152
      %p154 = scmp.ne.s32.totalorder %s143, %s144
      %p155 = scmp.eq.s32.totalorder %s23, 0
      %p156 = por %p154, %p155
      %p157 = scmp.ne.s32.totalorder %s143, %s144
      %p158 = scmp.eq.s32.totalorder %s24, 3
      %p159 = por %p157, %p158
      %p161 = scmp.ne.s32.totalorder %s144, %s160
      %p162 = scmp.eq.s32.totalorder %s24, 0
      %p163 = por %p161, %p162
      %s164 = ssub.s32 %s25, %s37
      %s165 = ssub.s32 %s26, %s33
      %s166 = sor.u32 %s164, %s165
      %p167 = scmp.eq.s32.totalorder %s166, 0
      %s169 = sadd.s32 %s168, 1
      %s170 = scalar_select %p167, %s168, %s169
      %p173 = pneg %p167
      %p174 = scmp.eq.s32.totalorder %s18, 3
      %p175 = por %p173, %p174
      %p176 = scmp.ne.s32.totalorder %s168, %s171
      %p177 = scmp.eq.s32.totalorder %s18, 0
      %p178 = por %p176, %p177
      %p179 = scmp.ne.s32.totalorder %s168, %s171
      %p180 = scmp.eq.s32.totalorder %s23, 3
      %p181 = por %p179, %p180
      %p182 = scmp.ne.s32.totalorder %s171, %s172
      %p183 = scmp.eq.s32.totalorder %s23, 0
      %p184 = por %p182, %p183
      %p185 = scmp.ne.s32.totalorder %s171, %s172
      %p186 = scmp.eq.s32.totalorder %s24, 3
      %p187 = por %p185, %p186
      %p189 = scmp.ne.s32.totalorder %s172, %s188
      %p190 = scmp.eq.s32.totalorder %s24, 0
      %p191 = por %p189, %p190
      %p192 = scmp.le.s32.totalorder 1, %s18
      %p193 = scmp.lt.s32.totalorder %s18, 5
      %p194 = pnand %p192, %p193
      %p195 = pneg %p194
      // Predicated region
      $region9: #{tpu_custom_call.1} parent=5 // pred_check
        _
      $region10: #{tpu_custom_call.1} parent=5 // pred_check_branch
        %197 = sbr.rel (%p194) target = $region12
      $region11: #{tpu_custom_call.1} parent=5 // pred_region
        %s198 = ssub.s32 %s18, 1
        // Predicated region
        $region13: #{tpu_custom_call.1} parent=11 // pred_check
          %p199 = pneg %p107
        $region14: #{tpu_custom_call.1} parent=11 // pred_check_branch
          %201 = sbr.rel (%p199) target = $region16
        $region15: #{tpu_custom_call.1} parent=11 // pred_region
          _
        $region16: #{tpu_custom_call.1} parent=11 // pred_fallthru
          _
        // Predicated region
        $region17: #{tpu_custom_call.1} parent=11 // pred_check
          %p202 = pneg %p128
        $region18: #{tpu_custom_call.1} parent=11 // pred_check_branch
          %204 = sbr.rel (%p202) target = $region20
        $region19: #{tpu_custom_call.1} parent=11 // pred_region
          _
        $region20: #{tpu_custom_call.1} parent=11 // pred_fallthru
          _
      $region12: #{tpu_custom_call.1} parent=5 // pred_fallthru
        _
      %p205 = scmp.lt.s32.totalorder %s18, 4
      // Predicated region
      $region21: #{tpu_custom_call.1} parent=5 // pred_check
        %p206 = pneg %p205
      $region22: #{tpu_custom_call.1} parent=5 // pred_check_branch
        %208 = sbr.rel (%p206) target = $region24
      $region23: #{tpu_custom_call.1} parent=5 // pred_region
        // Predicated region
        $region25: #{tpu_custom_call.1} parent=23 // pred_check
          %p209 = pneg %p52
        $region26: #{tpu_custom_call.1} parent=23 // pred_check_branch
          %211 = sbr.rel (%p209) target = $region28
        $region27: #{tpu_custom_call.1} parent=23 // pred_region
          %s212 = sand.u32 %s42, 1
          %s213 = sand.u32 %s42, 1
          %s214 = smul.addr %s213, 112
          %s215 = scalar_lea.vmem [#allocation2], %s214
          %s216 = smul.addr %s25, 28
          %s217 = sadd.s32 %s26, %s216
          %s218 = smul.addr %s217, 8
          %s219 = scalar_lea.vmem %s0, %s218
          // Predicated region
          $region29: #{tpu_custom_call.1} parent=27 // pred_check
            _
          $region30: #{tpu_custom_call.1} parent=27 // pred_check_branch
            %221 = sbr.rel (0) target = $region32
          $region31: #{tpu_custom_call.1} parent=27 // pred_region
            // Predicated region
            $region33: #{tpu_custom_call.1} parent=31 // pred_check
              _
            $region34: #{tpu_custom_call.1} parent=31 // pred_check_branch
              %223 = sbr.rel (0) target = $region36
            $region35: #{tpu_custom_call.1} parent=31 // pred_region
              // Predicated region
              $region48: #{tpu_custom_call.1} parent=35 // pred_check
                _
              $region49: #{tpu_custom_call.1} parent=35 // pred_check_branch
                %264 = sbr.rel (0) target = $region51
              $region50: #{tpu_custom_call.1} parent=35 // pred_region
                loop: start=0, step=1, limit=1
                $region52: #{tpu_custom_call.1} parent=50 // loop_pre_header
                  _
                $region53: #{tpu_custom_call.1} parent=50 // loop_header
                  %s266 = sphi 0, %s270
                  %p267 = scmp.ge.s32.totalorder %s266, 1
                  %s271 = sphi %s219, %s219
                  %s272 = sphi %s215, %s215
                $region54: #{tpu_custom_call.1} parent=50 // loop_header_branch
                  %269 = sbr.rel (%p267) target = $region58
                $region55: #{tpu_custom_call.1} parent=50 // loop_body
                  %v273 = vld [vmem:[%s271] sm:$0xff]
                  %274 = vst [vmem:[%s272] sm:$0xff] %v273
                  %v275 = vld [vmem:[%s271 + $0x10] sm:$0xff]
                  %276 = vst [vmem:[%s272 + $0x8] sm:$0xff] %v275
                  %v277 = vld [vmem:[%s271 + $0x20] sm:$0xff]
                  %278 = vst [vmem:[%s272 + $0x10] sm:$0xff] %v277
                  %v279 = vld [vmem:[%s271 + $0x30] sm:$0xff]
                  %280 = vst [vmem:[%s272 + $0x18] sm:$0xff] %v279
                  %v281 = vld [vmem:[%s271 + $0x40] sm:$0xff]
                  %282 = vst [vmem:[%s272 + $0x20] sm:$0xff] %v281
                  %v283 = vld [vmem:[%s271 + $0x50] sm:$0xff]
                  %284 = vst [vmem:[%s272 + $0x28] sm:$0xff] %v283
                  %v285 = vld [vmem:[%s271 + $0x60] sm:$0xff]
                  %286 = vst [vmem:[%s272 + $0x30] sm:$0xff] %v285
                  %v287 = vld [vmem:[%s271 + $0x70] sm:$0xff]
                  %288 = vst [vmem:[%s272 + $0x38] sm:$0xff] %v287
                  %v289 = vld [vmem:[%s271 + $0x80] sm:$0xff]
                  %290 = vst [vmem:[%s272 + $0x40] sm:$0xff] %v289
                  %v291 = vld [vmem:[%s271 + $0x90] sm:$0xff]
                  %292 = vst [vmem:[%s272 + $0x48] sm:$0xff] %v291
                  %v293 = vld [vmem:[%s271 + $0xa0] sm:$0xff]
                  %294 = vst [vmem:[%s272 + $0x50] sm:$0xff] %v293
                  %v295 = vld [vmem:[%s271 + $0xb0] sm:$0xff]
                  %296 = vst [vmem:[%s272 + $0x58] sm:$0xff] %v295
                  %v297 = vld [vmem:[%s271 + $0xc0] sm:$0xff]
                  %298 = vst [vmem:[%s272 + $0x60] sm:$0xff] %v297
                  %v299 = vld [vmem:[%s271 + $0xd0] sm:$0xff]
                  %300 = vst [vmem:[%s272 + $0x68] sm:$0xff] %v299
                $region56: #{tpu_custom_call.1} parent=50 // loop_footer
                  %s270 = sadd.s32 1, %s266
                $region57: #{tpu_custom_call.1} parent=50 // loop_footer_branch
                  %265 = sbr.rel target = $region53
                $region58: #{tpu_custom_call.1} parent=50 // loop_exit
                  _
              $region51: #{tpu_custom_call.1} parent=35 // pred_fallthru
                _
              // Predicated region
              $region59: #{tpu_custom_call.1} parent=35 // pred_check
                _
              $region60: #{tpu_custom_call.1} parent=35 // pred_check_branch
                %302 = sbr.rel target = $region62
              $region61: #{tpu_custom_call.1} parent=35 // pred_region
                _
              $region62: #{tpu_custom_call.1} parent=35 // pred_fallthru
                _
            $region36: #{tpu_custom_call.1} parent=31 // pred_fallthru
              _
            // Predicated region
            $region37: #{tpu_custom_call.1} parent=31 // pred_check
              _
            $region38: #{tpu_custom_call.1} parent=31 // pred_check_branch
              %225 = sbr.rel target = $region40
            $region39: #{tpu_custom_call.1} parent=31 // pred_region
              loop: start=0, step=1, limit=1
              $region41: #{tpu_custom_call.1} parent=39 // loop_pre_header
                _
              $region42: #{tpu_custom_call.1} parent=39 // loop_header
                %s228 = sphi 0, %s232
                %p229 = scmp.ge.s32.totalorder %s228, 1
                %s233 = sphi %s219, %s219
                %s234 = sphi %s215, %s215
              $region43: #{tpu_custom_call.1} parent=39 // loop_header_branch
                %231 = sbr.rel (%p229) target = $region47
              $region44: #{tpu_custom_call.1} parent=39 // loop_body
                %v235 = vld [vmem:[%s233] sm:$0xff]
                %236 = vst [vmem:[%s234] sm:$0xff] %v235
                %v237 = vld [vmem:[%s233 + $0x10] sm:$0xff]
                %238 = vst [vmem:[%s234 + $0x8] sm:$0xff] %v237
                %v239 = vld [vmem:[%s233 + $0x20] sm:$0xff]
                %240 = vst [vmem:[%s234 + $0x10] sm:$0xff] %v239
                %v241 = vld [vmem:[%s233 + $0x30] sm:$0xff]
                %242 = vst [vmem:[%s234 + $0x18] sm:$0xff] %v241
                %v243 = vld [vmem:[%s233 + $0x40] sm:$0xff]
                %244 = vst [vmem:[%s234 + $0x20] sm:$0xff] %v243
                %v245 = vld [vmem:[%s233 + $0x50] sm:$0xff]
                %246 = vst [vmem:[%s234 + $0x28] sm:$0xff] %v245
                %v247 = vld [vmem:[%s233 + $0x60] sm:$0xff]
                %248 = vst [vmem:[%s234 + $0x30] sm:$0xff] %v247
                %v249 = vld [vmem:[%s233 + $0x70] sm:$0xff]
                %250 = vst [vmem:[%s234 + $0x38] sm:$0xff] %v249
                %v251 = vld [vmem:[%s233 + $0x80] sm:$0xff]
                %252 = vst [vmem:[%s234 + $0x40] sm:$0xff] %v251
                %v253 = vld [vmem:[%s233 + $0x90] sm:$0xff]
                %254 = vst [vmem:[%s234 + $0x48] sm:$0xff] %v253
                %v255 = vld [vmem:[%s233 + $0xa0] sm:$0xff]
                %256 = vst [vmem:[%s234 + $0x50] sm:$0xff] %v255
                %v257 = vld [vmem:[%s233 + $0xb0] sm:$0xff]
                %258 = vst [vmem:[%s234 + $0x58] sm:$0xff] %v257
                %v259 = vld [vmem:[%s233 + $0xc0] sm:$0xff]
                %260 = vst [vmem:[%s234 + $0x60] sm:$0xff] %v259
                %v261 = vld [vmem:[%s233 + $0xd0] sm:$0xff]
                %262 = vst [vmem:[%s234 + $0x68] sm:$0xff] %v261
              $region45: #{tpu_custom_call.1} parent=39 // loop_footer
                %s232 = sadd.s32 1, %s228
              $region46: #{tpu_custom_call.1} parent=39 // loop_footer_branch
                %227 = sbr.rel target = $region42
              $region47: #{tpu_custom_call.1} parent=39 // loop_exit
                _
            $region40: #{tpu_custom_call.1} parent=31 // pred_fallthru
              _
          $region32: #{tpu_custom_call.1} parent=27 // pred_fallthru
            _
          %303 = vnop
        $region28: #{tpu_custom_call.1} parent=23 // pred_fallthru
          _
        // Predicated region
        $region63: #{tpu_custom_call.1} parent=23 // pred_check
          %p304 = pneg %p80
        $region64: #{tpu_custom_call.1} parent=23 // pred_check_branch
          %306 = sbr.rel (%p304) target = $region66
        $region65: #{tpu_custom_call.1} parent=23 // pred_region
          %p307 = scmp.lt.s32.totalorder %s25, 1
          %s308 = scalar_select %p307, %s25, 1
          %p309 = scmp.lt.s32.totalorder %s26, 1
          %s310 = scalar_select %p309, %s26, 1
          %s311 = smul.addr %s308, 2
          %s312 = sadd.s32 %s310, %s311
          %s313 = smul.addr %s312, 8
          %s314 = scalar_lea.vmem %s1, %s313
        $region66: #{tpu_custom_call.1} parent=23 // pred_fallthru
          _
      $region24: #{tpu_custom_call.1} parent=5 // pred_fallthru
        _
      %p315 = scmp.le.s32.totalorder 1, %s18
      %p316 = scmp.lt.s32.totalorder %s18, 5
      %p317 = pnand %p315, %p316
      %p318 = pneg %p317
      // Predicated region
      $region67: #{tpu_custom_call.1} parent=5 // pred_check
        _
      $region68: #{tpu_custom_call.1} parent=5 // pred_check_branch
        %320 = sbr.rel (%p317) target = $region70
      $region69: #{tpu_custom_call.1} parent=5 // pred_region
        %s321 = ssub.s32 %s18, 1
        %s322 = sand.u32 %s45, 1
        %s323 = sand.u32 %s45, 1
        %s324 = smul.addr %s323, 112
        %s325 = scalar_lea.vmem [#allocation2], %s324
        // Predicated region
        $region71: #{tpu_custom_call.1} parent=69 // pred_check
          %p326 = pneg %p58
        $region72: #{tpu_custom_call.1} parent=69 // pred_check_branch
          %328 = sbr.rel (%p326) target = $region74
        $region73: #{tpu_custom_call.1} parent=69 // pred_region
          _
        $region74: #{tpu_custom_call.1} parent=69 // pred_fallthru
          _
        %s329 = sand.u32 %s45, 1
        %s330 = sand.u32 %s45, 1
        %s331 = smul.addr %s330, 112
        %s332 = scalar_lea.vmem [#allocation2], %s331
        %p333 = pneg %p58
        %p334 = pneg %p55
        %p335 = scmp.lt.s32.totalorder %s27, 1
        %s336 = scalar_select %p335, %s27, 1
        %p337 = scmp.lt.s32.totalorder %s28, 1
        %s338 = scalar_select %p337, %s28, 1
        %s339 = smul.addr %s336, 2
        %s340 = sadd.s32 %s338, %s339
        %s341 = smul.addr %s340, 8
        %s342 = scalar_lea.vmem %s1, %s341
        %p343 = pneg %p86
        %p344 = pneg %p83
        %p345 = pneg %p107
        %p346 = pneg %p104
        %p347 = pneg %p128
        %p348 = pneg %p125
        %p349 = pneg %p156
        %p350 = pneg %p153
        %s351 = sand.u32 %s143, 1
        %s352 = scalar_lea.sflag [#allocation4], %s351
        %s353 = sand.u32 %s143, 1
        %s354 = smul.addr %s353, 8
        %s355 = scalar_lea.vmem [#allocation3], %s354
        %p356 = pneg %p184
        %p357 = pneg %p181
        %s358 = sand.u32 %s171, 1
        %s359 = scalar_lea.sflag [#allocation6], %s358
        %s360 = sand.u32 %s171, 1
        %s361 = smul.addr %s360, 8
        %s362 = scalar_lea.vmem [#allocation5], %s361
        %p363 = scmp.lt.s32.totalorder %s27, 1
        %s364 = scalar_select %p363, %s27, 1
        %p365 = scmp.lt.s32.totalorder %s28, 1
        %s366 = scalar_select %p365, %s28, 1
        %s367 = smul.addr %s364, 2
        %s368 = sadd.s32 %s366, %s367
        %s369 = smul.addr %s368, 8
        %s370 = scalar_lea.vmem %s1, %s369
        %v371 = vld [vmem:[%s2] sm:$0xff]
        %v372 = vld [vmem:[%s2 + $0x8] sm:$0xff]
        %v373 = vld [vmem:[%s2 + $0x10] sm:$0xff]
        %v374 = vld [vmem:[%s2 + $0x18] sm:$0xff]
        %v375 = vld [vmem:[%s325] sm:$0xff]
        %v376 = vld [vmem:[%s325 + $0x8] sm:$0xff]
        %v377 = vld [vmem:[%s325 + $0x10] sm:$0xff]
        %v378 = vld [vmem:[%s325 + $0x18] sm:$0xff]
        %v379 = vld [vmem:[%s325 + $0x20] sm:$0xff]
        %v380 = vld [vmem:[%s325 + $0x28] sm:$0xff]
        %v381 = vld [vmem:[%s325 + $0x30] sm:$0xff]
        %v382 = vld [vmem:[%s325 + $0x38] sm:$0xff]
        %v383 = vld [vmem:[%s325 + $0x40] sm:$0xff]
        %v384 = vld [vmem:[%s325 + $0x48] sm:$0xff]
        %v385 = vld [vmem:[%s325 + $0x50] sm:$0xff]
        %v386 = vld [vmem:[%s325 + $0x58] sm:$0xff]
        %v387 = vld [vmem:[%s325 + $0x60] sm:$0xff]
        %v388 = vld [vmem:[%s325 + $0x68] sm:$0xf]
        %v389 = vld [vmem:[%s3] sm:$0xff]
        %v390 = vld [vmem:[%s3 + $0x8] sm:$0xff]
        %v391 = vld [vmem:[%s3 + $0x10] sm:$0xff]
        %v392 = vld [vmem:[%s3 + $0x18] sm:$0xff]
        %394 = vset.pattern.permute.xlu0 0
        %395 = vperm.xlu0 %394, %v389
        %v396 = vpop.permute.xlu0 %395
        %399 = vset.pattern.permute.xlu0 0
        %400 = vperm.xlu0 %399, %v390
        %v401 = vpop.permute.xlu0 %400
        %404 = vset.pattern.permute.xlu0 0
        %405 = vperm.xlu0 %404, %v391
        %v406 = vpop.permute.xlu0 %405
        %409 = vset.pattern.permute.xlu0 0
        %410 = vperm.xlu0 %409, %v392
        %v411 = vpop.permute.xlu0 %410
        %vm413 = vcmask 883712
        %v415 = vsel %vm413, %v371, 0
        %v418 = vsel %vm413, %v372, 0
        %v421 = vsel %vm413, %v373, 0
        %v424 = vsel %vm413, %v374, 0
        %vm426 = vcmask 1043456
        %v428 = vsel %vm426, %v388, 0
        %430 = vmatprep.subr.mxu0 0.0
        %431 = vmatpush1.msra.mxu0 %v375
        %432 = vmatprep.subr.mxu0 0.0
        %433 = vmatpush1.msra.mxu0 %v376
        %434 = vmatprep.subr.mxu0 0.0
        %435 = vmatpush1.msra.mxu0 %v377
        %436 = vmatprep.subr.mxu0 0.0
        %437 = vmatpush1.msra.mxu0 %v378
        %438 = vmatprep.subr.mxu0 0.0
        %439 = vmatpush1.msra.mxu0 %v379
        %440 = vmatprep.subr.mxu0 0.0
        %441 = vmatpush1.msra.mxu0 %v380
        %442 = vmatprep.subr.mxu0 0.0
        %443 = vmatpush1.msra.mxu0 %v381
        %444 = vmatprep.subr.mxu0 0.0
        %445 = vmatpush1.msra.mxu0 %v382
        %446 = vmatprep.subr.mxu0 0.0
        %447 = vmatpush1.msra.mxu0 %v383
        %448 = vmatprep.subr.mxu0 0.0
        %449 = vmatpush1.msra.mxu0 %v384
        %450 = vmatprep.subr.mxu0 0.0
        %451 = vmatpush1.msra.mxu0 %v385
        %452 = vmatprep.subr.mxu0 0.0
        %453 = vmatpush1.msra.mxu0 %v386
        %454 = vmatprep.subr.mxu0 0.0
        %455 = vmatpush1.msra.mxu0 %v387
        %456 = vmatprep.subr.mxu0 0.0
        %457 = vmatpush1.msra.mxu0 %v428
        %458 = vmatprep.subr.mxu0 0.0
        %459 = vmatpush1.msra.mxu0 0.0
        %460 = vmatprep.subr.mxu0 0.0
        %461 = vmatpush1.msra.mxu0 0.0
        %462 = vmatprep.subr.mxu0 0.0
        %463 = vmatpush1.msra.mxu0 0.0
        %464 = vmatprep.subr.mxu0 0.0
        %465 = vmatpush1.msra.mxu0 0.0
        %466 = vmatprep.subr.mxu0 0.0
        %467 = vmatpush1.msra.mxu0 0.0
        %468 = vmatprep.subr.mxu0 0.0
        %469 = vmatpush1.msra.mxu0 0.0
        %470 = vmatprep.subr.mxu0 0.0
        %471 = vmatpush1.msra.mxu0 0.0
        %472 = vmatprep.subr.mxu0 0.0
        %473 = vmatpush1.msra.mxu0 0.0
        %474 = vmatprep.subr.mxu0 0.0
        %475 = vmatpush1.msra.mxu0 0.0
        %476 = vmatprep.subr.mxu0 0.0
        %477 = vmatpush1.msra.mxu0 0.0
        %478 = vmatprep.subr.mxu0 0.0
        %479 = vmatpush1.msra.mxu0 0.0
        %480 = vmatprep.subr.mxu0 0.0
        %481 = vmatpush1.msra.mxu0 0.0
        %482 = vmatprep.subr.mxu0 0.0
        %483 = vmatpush1.msra.mxu0 0.0
        %484 = vmatprep.subr.mxu0 0.0
        %485 = vmatpush1.msra.mxu0 0.0
        %486 = vmatprep.subr.mxu0 0.0
        %487 = vmatpush1.msra.mxu0 0.0
        %488 = vmatprep.subr.mxu0 0.0
        %489 = vmatpush1.msra.mxu0 0.0
        %490 = vmatprep.subr.mxu0 0.0
        %491 = vmatpush1.msra.mxu0 0.0
        %492 = vmatprep.subr.mxu0 0.0
        %493 = vmatpush1.msra.mxu0 0.0
        %494 = vmatprep.mubr.f32.mxu0 0.0
        %495 = vmatmul.mubr.f32.gmra.mrb[0].mxu0 %v415
        %v496 = vpop.f32.mrb[0].mxu0
        %v497 = vadd.f32 %v396, %v496
        %v498 = vpop.f32.mrb[0].mxu0
        %499 = vmatprep.mubr.f32.mxu0 0.0
        %500 = vmatmul.mubr.f32.gmra.mrb[0].mxu0 %v418
        %v501 = vpop.f32.mrb[0].mxu0
        %v502 = vadd.f32 %v401, %v501
        %v503 = vpop.f32.mrb[0].mxu0
        %504 = vmatprep.mubr.f32.mxu0 0.0
        %505 = vmatmul.mubr.f32.gmra.mrb[0].mxu0 %v421
        %v506 = vpop.f32.mrb[0].mxu0
        %v507 = vadd.f32 %v406, %v506
        %v508 = vpop.f32.mrb[0].mxu0
        %509 = vmatprep.mubr.f32.mxu0 0.0
        %510 = vmatmul.mubr.f32.gmra.mrb[0].mxu0 %v424
        %v511 = vpop.f32.mrb[0].mxu0
        %v512 = vadd.f32 %v411, %v511
        %v513 = vpop.f32.mrb[0].mxu0
        %514 = vdwg.mxu0
        %v515 = vxor.u32 %v497, 2147483648
        %v516 = vmul.f32 %v515, 1.442695
        %v517 = vpow.pop %v516
        %v518 = vadd.f32 %v517, 1.0
        %v519 = vrcp.pop %v518
        %v520 = vmul.f32 1.0, %v519
        %v521 = vxor.u32 %v502, 2147483648
        %v522 = vmul.f32 %v521, 1.442695
        %v523 = vpow.pop %v522
        %v524 = vadd.f32 %v523, 1.0
        %v525 = vrcp.pop %v524
        %v526 = vmul.f32 1.0, %v525
        %v527 = vxor.u32 %v507, 2147483648
        %v528 = vmul.f32 %v527, 1.442695
        %v529 = vpow.pop %v528
        %v530 = vadd.f32 %v529, 1.0
        %v531 = vrcp.pop %v530
        %v532 = vmul.f32 1.0, %v531
        %v533 = vtanh.pop %v512
        %v534 = vld [vmem:[%s370] sm:$0xff]
        %v535 = vmul.f32 %v526, %v534
        %v536 = vmul.f32 %v520, %v533
        %v537 = vadd.f32 %v535, %v536
        %v538 = vtanh.pop %v537
        %v539 = vmul.f32 %v532, %v538
        %540 = vst [vmem:[%s362] sm:$0xff] %v537
        %541 = vst [vmem:[%s355] sm:$0xff] %v539
        %s542 = sand.u32 %s143, 1
        %s543 = scalar_lea.sflag [#allocation4], %s542
        %s544 = sand.u32 %s143, 1
        %s545 = smul.addr %s544, 8
        %s546 = scalar_lea.vmem [#allocation3], %s545
        %s547 = sand.u32 %s171, 1
        %s548 = scalar_lea.sflag [#allocation6], %s547
        %s549 = sand.u32 %s171, 1
        %s550 = smul.addr %s549, 8
        %s551 = scalar_lea.vmem [#allocation5], %s550
        // Predicated region
        $region75: #{tpu_custom_call.1} parent=69 // pred_check
          %p552 = pneg %p153
        $region76: #{tpu_custom_call.1} parent=69 // pred_check_branch
          %554 = sbr.rel (%p552) target = $region78
        $region77: #{tpu_custom_call.1} parent=69 // pred_region
          %s556 = ssub.s32 128, 128
          %557 = vsyncadd %s543, %s556
          %s558 = smul.addr %s27, 2
          %s559 = sadd.s32 %s28, %s558
          %s560 = smul.addr %s559, 128
          %s561 = scalar_lea.hbm %s4, %s560
          %s563 = sshll.u32 %s546, 4
          %s564 = int_to_ptr.vmem [resolvable:$true] %s563
          %566 = dma.vmem_to_hbm [thread:$0]  %s564, 128, %s561, %s543
        $region78: #{tpu_custom_call.1} parent=69 // pred_fallthru
          _
        // Predicated region
        $region79: #{tpu_custom_call.1} parent=69 // pred_check
          %p567 = pneg %p181
        $region80: #{tpu_custom_call.1} parent=69 // pred_check_branch
          %569 = sbr.rel (%p567) target = $region82
        $region81: #{tpu_custom_call.1} parent=69 // pred_region
          %s571 = ssub.s32 128, 128
          %572 = vsyncadd %s548, %s571
          %s573 = smul.addr %s27, 2
          %s574 = sadd.s32 %s28, %s573
          %s575 = smul.addr %s574, 128
          %s576 = scalar_lea.hbm %s5, %s575
          %s578 = sshll.u32 %s551, 4
          %s579 = int_to_ptr.vmem [resolvable:$true] %s578
          %581 = dma.vmem_to_hbm [thread:$0]  %s579, 128, %s576, %s548
        $region82: #{tpu_custom_call.1} parent=69 // pred_fallthru
          _
      $region70: #{tpu_custom_call.1} parent=5 // pred_fallthru
        _
      %p582 = scmp.le.s32.totalorder 2, %s18
      // Predicated region
      $region83: #{tpu_custom_call.1} parent=5 // pred_check
        %p583 = pneg %p582
      $region84: #{tpu_custom_call.1} parent=5 // pred_check_branch
        %585 = sbr.rel (%p583) target = $region86
      $region85: #{tpu_custom_call.1} parent=5 // pred_region
        %s586 = ssub.s32 %s18, 2
        // Predicated region
        $region87: #{tpu_custom_call.1} parent=85 // pred_check
          %p587 = pneg %p159
        $region88: #{tpu_custom_call.1} parent=85 // pred_check_branch
          %589 = sbr.rel (%p587) target = $region90
        $region89: #{tpu_custom_call.1} parent=85 // pred_region
          %s590 = sand.u32 %s144, 1
          %s591 = scalar_lea.sflag [#allocation4], %s590
          %s592 = sand.u32 %s144, 1
          %s593 = smul.addr %s592, 8
          %s594 = scalar_lea.vmem [#allocation3], %s593
          %595 = dma.done %s591, 128
        $region90: #{tpu_custom_call.1} parent=85 // pred_fallthru
          _
        // Predicated region
        $region91: #{tpu_custom_call.1} parent=85 // pred_check
          %p596 = pneg %p187
        $region92: #{tpu_custom_call.1} parent=85 // pred_check_branch
          %598 = sbr.rel (%p596) target = $region94
        $region93: #{tpu_custom_call.1} parent=85 // pred_region
          %s599 = sand.u32 %s172, 1
          %s600 = scalar_lea.sflag [#allocation6], %s599
          %s601 = sand.u32 %s172, 1
          %s602 = smul.addr %s601, 8
          %s603 = scalar_lea.vmem [#allocation5], %s602
          %604 = dma.done %s600, 128
        $region94: #{tpu_custom_call.1} parent=85 // pred_fallthru
          _
      $region86: #{tpu_custom_call.1} parent=5 // pred_fallthru
        _
    $region6: #{tpu_custom_call.1} parent=1 // loop_footer
      %s22 = sadd.s32 1, %s18
    $region7: #{tpu_custom_call.1} parent=1 // loop_footer_branch
      %17 = sbr.rel target = $region3
    $region8: #{tpu_custom_call.1} parent=1 // loop_exit
      _
    %605 = vsyncpa [#allocation4], 1
    %s606 = scalar_lea.sflag [#allocation4], 1
    %607 = vsyncpa %s606, 1
    %608 = vsyncpa [#allocation6], 1
    %s609 = scalar_lea.sflag [#allocation6], 1
    %610 = vsyncpa %s609, 1

</llo_original>
